<compile_context>
chip_gen: v7x
topology: tpu7x:2x2x1
jax: 0.10.0
libtpu: 0.0.40
codegen_flags: <defaults>
</compile_context>

<pallas_src>
import math

import jax
import jax.numpy as jnp
from jax import lax
from jax.experimental import pallas as pl
from jax.experimental.pallas import tpu as pltpu


def _round_up(x, m):
    return ((x + m - 1) // m) * m


def _vmem_budget():
    """(vmem_limit_bytes, per-x-buffer budget) derived from the chip."""
    try:
        cap = int(pltpu.get_tpu_info().vmem_capacity_bytes)
    except Exception:
        cap = 64 * 1024 * 1024              # conservative (v7x per-TC VMEM)
    vmem_limit = min((cap * 3) // 4, cap - (8 << 20))   # 48 MiB v7x / 96 MiB v6e
    x_buf_budget = vmem_limit // 3          # x is double-buffered by the pipeline
    return int(vmem_limit), int(x_buf_budget)


def i3d_vis_encoder_forward(input_img, w_proj, b_proj, w_fc1, b_fc1, *, tk=None):
    """input_img: (B, C, T, H, W) -> (B, 128) float32."""
    B, C, T, H, W = input_img.shape
    thw = T * H * W
    n_cls = w_proj.shape[1]                 # 400 (I3D logits width)
    n_hidden = w_fc1.shape[1]               # 128 (fc1 width)
    itemsize = jnp.dtype(input_img.dtype).itemsize

    # ---- row layout -------------------------------------------------------
    # Refold each (b, c) row into r sub-rows (free contiguous reshape) so the
    # per-batch row block C*r is a multiple of 8 (full sublanes) and the batch
    # axis can be a parallel grid dimension (one row block == one batch).
    # Falls back to a single full-width row block if thw has the wrong parity.
    needed = 8 // math.gcd(C, 8)
    if thw % needed == 0:
        r = needed
        num_row_blocks = B                  # one grid block per batch
        groups = 1                          # batches per row block
    else:
        r = 1
        num_row_blocks = 1
        groups = B
    rows = groups * C * r                   # rows per block (sublane axis)
    thw_r = thw // r                        # lanes per row
    rows_per_group = C * r

    # ---- lane tile for the streamed reduction (multiple of 128) -----------
    vmem_limit, x_budget = _vmem_budget()
    if tk is None:
        tk = x_budget // (rows * itemsize)
    tk = max(128, min(_round_up(thw_r, 128), (tk // 128) * 128))
    num_k = pl.cdiv(thw_r, tk)
    tail = thw_r - (num_k - 1) * tk         # valid lanes in the last block
    ragged = tail != tk                     # last block partially OOB -> mask

    # ---- glue reshapes (all free / contiguous; no HBM copy of the video) --
    x2 = input_img.reshape(num_row_blocks * rows, thw_r)

    # Head weights padded to a lane-dense 512-wide block (zero rows/cols).
    n_pad = _round_up(n_cls, 128)                                     # 400->512
    wp_blk = jnp.tile(jnp.repeat(w_proj, r, axis=0), (groups, 1))     # (rows,400)
    wp_blk = jnp.pad(wp_blk, ((0, 0), (0, n_pad - n_cls)))            # (rows,512)
    bp2 = jnp.pad(b_proj.reshape(1, n_cls), ((0, 0), (0, n_pad - n_cls)))
    w1p = jnp.pad(w_fc1, ((0, n_pad - n_cls), (0, 0)))                # (512,128)
    b12 = b_fc1.reshape(1, n_hidden)

    inv_thw = 1.0 / float(thw)

    def kernel(x_ref, wp_ref, bp_ref, w1_ref, b1_ref, o_ref, acc_ref):
        k = pl.program_id(1)

        @pl.when(k == 0)
        def _():
            acc_ref[...] = jnp.zeros_like(acc_ref)

        def accumulate(xv):
            # Lane-axis sum: VALU tree over lane-tiles + one small XLU fold,
            # fully hidden under the HBM->VMEM DMA of the next block.
            acc_ref[...] += jnp.sum(xv, axis=-1, keepdims=True)

        # Streaming phase: per-row partial sums over the T*H*W (lane) axis.
        if ragged:
            is_last = k == num_k - 1

            @pl.when(is_last)
            def _():
                lane = lax.broadcasted_iota(jnp.int32, (rows, tk), 1)
                accumulate(jnp.where(lane < tail,
                                     x_ref[...].astype(jnp.float32), 0.0))

            @pl.when(jnp.logical_not(is_last))
            def _():
                accumulate(x_ref[...].astype(jnp.float32))
        else:
            accumulate(x_ref[...].astype(jnp.float32))

        # Finalize: mean -> I3D logits projection -> fc1 -> (dropout=id) -> ReLU
        @pl.when(k == num_k - 1)
        def _():
            pooled = acc_ref[...] * inv_thw                # (rows, 1)
            contrib = pooled * wp_ref[...]                 # (rows, n_pad)
            if groups == 1:
                feat = jnp.sum(contrib, axis=0, keepdims=True) + bp_ref[...]
            else:
                row_id = lax.broadcasted_iota(jnp.int32, (groups, rows), 1)
                grp_id = lax.broadcasted_iota(jnp.int32, (groups, rows), 0)
                sel = (row_id // rows_per_group == grp_id).astype(jnp.float32)
                feat = jnp.dot(sel, contrib,
                               preferred_element_type=jnp.float32) + bp_ref[...]
            h = jnp.dot(feat, w1_ref[...],
                        preferred_element_type=jnp.float32) + b1_ref[...]
            o_ref[0] = jnp.maximum(h, 0.0)

    out = pl.pallas_call(
        kernel,
        out_shape=jax.ShapeDtypeStruct((num_row_blocks, groups, n_hidden),
                                       jnp.float32),
        grid_spec=pltpu.PrefetchScalarGridSpec(
            num_scalar_prefetch=0,
            grid=(num_row_blocks, num_k),                  # reduction axis last
            in_specs=[
                pl.BlockSpec((rows, tk), lambda i, k: (i, k)),        # streamed x
                pl.BlockSpec((rows, n_pad), lambda i, k: (0, 0)),     # resident wp
                pl.BlockSpec((1, n_pad), lambda i, k: (0, 0)),        # resident bp
                pl.BlockSpec((n_pad, n_hidden), lambda i, k: (0, 0)),  # resident w1
                pl.BlockSpec((1, n_hidden), lambda i, k: (0, 0)),     # resident b1
            ],
            out_specs=pl.BlockSpec((1, groups, n_hidden),
                                   lambda i, k: (i, 0, 0)),
            scratch_shapes=[pltpu.VMEM((rows, 1), jnp.float32)],      # pooled acc
        ),
        compiler_params=pltpu.CompilerParams(
            dimension_semantics=("parallel", "arbitrary"),
            vmem_limit_bytes=vmem_limit,
        ),
    )(x2, wp_blk, bp2, w1p, b12)
    return out.reshape(B, n_hidden)


def make_params(key, in_channels):
    """Deterministic synthetic parameters (shapes from the module __init__)."""
    k1, k2, k3, k4 = jax.random.split(key, 4)
    # I3D logits head: pooled features (C) -> 400 classes
    w_proj = jax.random.normal(k1, (in_channels, 400), jnp.float32) * 0.05
    b_proj = jax.random.normal(k2, (400,), jnp.float32) * 0.01
    # fc1: Linear(400, 128)  (PyTorch-style uniform init bound)
    bound = 1.0 / jnp.sqrt(400.0)
    w_fc1 = jax.random.uniform(k3, (400, 128), jnp.float32, -bound, bound)
    b_fc1 = jax.random.uniform(k4, (128,), jnp.float32, -bound, bound)
    return w_proj, b_proj, w_fc1, b_fc1


if __name__ == "__main__":
    key = jax.random.PRNGKey(0)
    k_x, k_p = jax.random.split(key)

    # Small video consistent with the module default (input_channels=6):
    # batch=2, channels=6, time=8, spatial=16x16 (NCDHW).
    B, C, T, H, W = 2, 6, 8, 16, 16
    input_img = jax.random.normal(k_x, (B, C, T, H, W), jnp.float32)
    w_proj, b_proj, w_fc1, b_fc1 = make_params(k_p, C)

    # thw=2048, refold r=4 -> 512 lanes/row; tk=384 gives two reduction steps
    # including a ragged (in-kernel masked) tail, exercising both the
    # accumulate and the tail-mask paths.  Default tk auto-sizes from VMEM.
    out = i3d_vis_encoder_forward(input_img, w_proj, b_proj, w_fc1, b_fc1,
                                  tk=384)
    out = jax.block_until_ready(out)

    # Pure-JAX reference check of the same math.
    pooled = jnp.mean(input_img.reshape(B, C, -1), axis=-1)
    feat = pooled @ w_proj + b_proj
    ref = jnp.maximum(feat @ w_fc1 + b_fc1, 0.0)
    assert out.shape == (B, 128)
    assert jnp.allclose(out, ref, atol=1e-4, rtol=1e-4)

    print("KERNEL_OK")
</pallas_src>

<mosaic_0001>
module attributes {stable_mosaic.version = 11 : i64} {
  func.func @kernel(%arg0: i32, %arg1: i32, %arg2: memref<24x384xf32, #tpu.memory_space<vmem>>, %arg3: memref<24x512xf32, #tpu.memory_space<vmem>>, %arg4: memref<1x512xf32, #tpu.memory_space<vmem>>, %arg5: memref<512x128xf32, #tpu.memory_space<vmem>>, %arg6: memref<1x128xf32, #tpu.memory_space<vmem>>, %arg7: memref<1x1x128xf32, #tpu.memory_space<vmem>>, %arg8: memref<24x1xf32, #tpu.memory_space<vmem>>) attributes {dimension_semantics = [#tpu.dimension_semantics<parallel>, #tpu.dimension_semantics<arbitrary>], iteration_bounds = array<i64: 2, 2>, scalar_prefetch = 0 : i64, scratch_operands = 1 : i64, tpu.core_type = #tpu.core_type<tc>, window_params = [{transform_indices = @transform_0, window_bounds = array<i64: 24, 384>}, {pipeline_mode = #tpu.pipeline_mode<synchronous>, transform_indices = @transform_1, window_bounds = array<i64: 24, 512>}, {pipeline_mode = #tpu.pipeline_mode<synchronous>, transform_indices = @transform_2, window_bounds = array<i64: 1, 512>}, {pipeline_mode = #tpu.pipeline_mode<synchronous>, transform_indices = @transform_3, window_bounds = array<i64: 512, 128>}, {pipeline_mode = #tpu.pipeline_mode<synchronous>, transform_indices = @transform_4, window_bounds = array<i64: 1, 128>}, {transform_indices = @transform_5, window_bounds = array<i64: 1, 1, 128>}]} {
    %c0_i32 = arith.constant 0 : i32
    %0 = arith.cmpi eq, %arg1, %c0_i32 : i32
    %1 = arith.extui %0 : i1 to i32
    %c0_i32_0 = arith.constant 0 : i32
    %2 = arith.cmpi ne, %1, %c0_i32_0 : i32
    scf.if %2 {
      %cst = arith.constant 0.000000e+00 : f32
      %12 = vector.broadcast %cst : f32 to vector<24x1xf32>
      %c0 = arith.constant 0 : index
      %c0_5 = arith.constant 0 : index
      %13 = vector.load %arg8[%c0, %c0_5] : memref<24x1xf32, #tpu.memory_space<vmem>>, vector<24x1xf32>
      tpu.vector_store %arg8[%c0, %c0_5], %12 {strides = array<i32>} : memref<24x1xf32, #tpu.memory_space<vmem>>, vector<24x1xf32>,
    } else {
    }
    %c1_i32 = arith.constant 1 : i32
    %3 = arith.cmpi eq, %arg1, %c1_i32 : i32
    %4 = arith.extui %3 : i1 to i32
    %c0_i32_1 = arith.constant 0 : i32
    %5 = arith.cmpi ne, %4, %c0_i32_1 : i32
    scf.if %5 {
      %12 = tpu.iota {dimensions = array<i32: 1>} : vector<24x384xi32>
      %c128_i32 = arith.constant 128 : i32
      %13 = vector.broadcast %c128_i32 : i32 to vector<24x384xi32>
      %14 = arith.cmpi slt, %12, %13 : vector<24x384xi32>
      %c0 = arith.constant 0 : index
      %c0_5 = arith.constant 0 : index
      %15 = vector.load %arg2[%c0, %c0_5] : memref<24x384xf32, #tpu.memory_space<vmem>>, vector<24x384xf32>
      %cst = arith.constant 0.000000e+00 : f32
      %16 = vector.broadcast %cst : f32 to vector<24x384xf32>
      %17 = arith.select %14, %15, %16 : vector<24x384xi1>, vector<24x384xf32>
      %c0_6 = arith.constant 0 : index
      %c0_7 = arith.constant 0 : index
      %18 = vector.load %arg8[%c0_6, %c0_7] : memref<24x1xf32, #tpu.memory_space<vmem>>, vector<24x1xf32>
      %cst_8 = arith.constant dense<0.000000e+00> : vector<24xf32>
      %19 = vector.multi_reduction <add>, %17, %cst_8 [1] : vector<24x384xf32> to vector<24xf32>
      %20 = vector.shape_cast %19 : vector<24xf32> to vector<24x1xf32>
      %21 = arith.addf %18, %20 : vector<24x1xf32>
      %c0_9 = arith.constant 0 : index
      %c0_10 = arith.constant 0 : index
      %22 = vector.load %arg8[%c0_9, %c0_10] : memref<24x1xf32, #tpu.memory_space<vmem>>, vector<24x1xf32>
      tpu.vector_store %arg8[%c0_9, %c0_10], %21 {strides = array<i32>} : memref<24x1xf32, #tpu.memory_space<vmem>>, vector<24x1xf32>,
    } else {
    }
    %true = arith.constant true
    %6 = arith.xori %3, %true : i1
    %7 = arith.extui %6 : i1 to i32
    %c0_i32_2 = arith.constant 0 : i32
    %8 = arith.cmpi ne, %7, %c0_i32_2 : i32
    scf.if %8 {
      %c0 = arith.constant 0 : index
      %c0_5 = arith.constant 0 : index
      %12 = vector.load %arg2[%c0, %c0_5] : memref<24x384xf32, #tpu.memory_space<vmem>>, vector<24x384xf32>
      %c0_6 = arith.constant 0 : index
      %c0_7 = arith.constant 0 : index
      %13 = vector.load %arg8[%c0_6, %c0_7] : memref<24x1xf32, #tpu.memory_space<vmem>>, vector<24x1xf32>
      %cst = arith.constant dense<0.000000e+00> : vector<24xf32>
      %14 = vector.multi_reduction <add>, %12, %cst [1] : vector<24x384xf32> to vector<24xf32>
      %15 = vector.shape_cast %14 : vector<24xf32> to vector<24x1xf32>
      %16 = arith.addf %13, %15 : vector<24x1xf32>
      %c0_8 = arith.constant 0 : index
      %c0_9 = arith.constant 0 : index
      %17 = vector.load %arg8[%c0_8, %c0_9] : memref<24x1xf32, #tpu.memory_space<vmem>>, vector<24x1xf32>
      tpu.vector_store %arg8[%c0_8, %c0_9], %16 {strides = array<i32>} : memref<24x1xf32, #tpu.memory_space<vmem>>, vector<24x1xf32>,
    } else {
    }
    %c1_i32_3 = arith.constant 1 : i32
    %9 = arith.cmpi eq, %arg1, %c1_i32_3 : i32
    %10 = arith.extui %9 : i1 to i32
    %c0_i32_4 = arith.constant 0 : i32
    %11 = arith.cmpi ne, %10, %c0_i32_4 : i32
    scf.if %11 {
      %c0 = arith.constant 0 : index
      %c0_5 = arith.constant 0 : index
      %12 = vector.load %arg8[%c0, %c0_5] : memref<24x1xf32, #tpu.memory_space<vmem>>, vector<24x1xf32>
      %cst = arith.constant 4.8828125E-4 : f32
      %13 = vector.broadcast %cst : f32 to vector<24x1xf32>
      %14 = arith.mulf %12, %13 : vector<24x1xf32>
      %c0_6 = arith.constant 0 : index
      %c0_7 = arith.constant 0 : index
      %15 = vector.load %arg3[%c0_6, %c0_7] : memref<24x512xf32, #tpu.memory_space<vmem>>, vector<24x512xf32>
      %16 = vector.broadcast %14 : vector<24x1xf32> to vector<24x512xf32>
      %17 = arith.mulf %16, %15 : vector<24x512xf32>
      %cst_8 = arith.constant dense<0.000000e+00> : vector<512xf32>
      %18 = vector.multi_reduction <add>, %17, %cst_8 [0] : vector<24x512xf32> to vector<512xf32>
      %19 = vector.shape_cast %18 : vector<512xf32> to vector<1x512xf32>
      %c0_9 = arith.constant 0 : index
      %c0_10 = arith.constant 0 : index
      %20 = vector.load %arg4[%c0_9, %c0_10] : memref<1x512xf32, #tpu.memory_space<vmem>>, vector<1x512xf32>
      %21 = arith.addf %19, %20 : vector<1x512xf32>
      %c0_11 = arith.constant 0 : index
      %c0_12 = arith.constant 0 : index
      %22 = vector.load %arg5[%c0_11, %c0_12] : memref<512x128xf32, #tpu.memory_space<vmem>>, vector<512x128xf32>
      %cst_13 = arith.constant dense<0.000000e+00> : vector<1x128xf32>
      %23 = tpu.matmul %21, %22, %cst_13 {dimension_numbers = #tpu.dot_dimension_numbers<[1], [0], [0], [1], [0, 0, 1, 1], [], []>} : vector<1x512xf32>, vector<512x128xf32>, vector<1x128xf32> -> vector<1x128xf32>
      %c0_14 = arith.constant 0 : index
      %c0_15 = arith.constant 0 : index
      %24 = vector.load %arg6[%c0_14, %c0_15] : memref<1x128xf32, #tpu.memory_space<vmem>>, vector<1x128xf32>
      %25 = arith.addf %23, %24 : vector<1x128xf32>
      %cst_16 = arith.constant 0.000000e+00 : f32
      %26 = vector.broadcast %cst_16 : f32 to vector<1x128xf32>
      %27 = arith.maximumf %25, %26 : vector<1x128xf32>
      %c0_17 = arith.constant 0 : index
      %c0_18 = arith.constant 0 : index
      %c0_19 = arith.constant 0 : index
      %28 = vector.load %arg7[%c0_17, %c0_18, %c0_19] : memref<1x1x128xf32, #tpu.memory_space<vmem>>, vector<1x1x128xf32>
      %29 = vector.shape_cast %28 : vector<1x1x128xf32> to vector<1x128xf32>
      %30 = vector.shape_cast %27 : vector<1x128xf32> to vector<1x1x128xf32>
      tpu.vector_store %arg7[%c0_17, %c0_18, %c0_19], %30 {strides = array<i32>} : memref<1x1x128xf32, #tpu.memory_space<vmem>>, vector<1x1x128xf32>,
    } else {
    }
    return
  }
  func.func @transform_0(%arg0: i32, %arg1: i32) -> (i32, i32) {
    %c0_i32 = arith.constant 0 : i32
    return %arg0, %arg1 : i32, i32
  }
  func.func @transform_1(%arg0: i32, %arg1: i32) -> (i32, i32) {
    %c0_i32 = arith.constant 0 : i32
    %c0_i32_0 = arith.constant 0 : i32
    %c0_i32_1 = arith.constant 0 : i32
    return %c0_i32, %c0_i32_0 : i32, i32
  }
  func.func @transform_2(%arg0: i32, %arg1: i32) -> (i32, i32) {
    %c0_i32 = arith.constant 0 : i32
    %c0_i32_0 = arith.constant 0 : i32
    %c0_i32_1 = arith.constant 0 : i32
    return %c0_i32, %c0_i32_0 : i32, i32
  }
  func.func @transform_3(%arg0: i32, %arg1: i32) -> (i32, i32) {
    %c0_i32 = arith.constant 0 : i32
    %c0_i32_0 = arith.constant 0 : i32
    %c0_i32_1 = arith.constant 0 : i32
    return %c0_i32, %c0_i32_0 : i32, i32
  }
  func.func @transform_4(%arg0: i32, %arg1: i32) -> (i32, i32) {
    %c0_i32 = arith.constant 0 : i32
    %c0_i32_0 = arith.constant 0 : i32
    %c0_i32_1 = arith.constant 0 : i32
    return %c0_i32, %c0_i32_0 : i32, i32
  }
  func.func @transform_5(%arg0: i32, %arg1: i32) -> (i32, i32, i32) {
    %c0_i32 = arith.constant 0 : i32
    %c0_i32_0 = arith.constant 0 : i32
    %c0_i32_1 = arith.constant 0 : i32
    return %arg0, %c0_i32, %c0_i32_0 : i32, i32, i32
  }
}

</mosaic_0001>

<llo_original>
// kernel: tpu_custom_call.1
$region0: #{tpu_custom_call.1}
  #allocation0 [shape = 'u32[]', space=smem, size = 0x4, offset = 0x4, fixed_abs, tag = 'smem constant byte address 0x4 - core index']
  #allocation1 [shape = 'u32[144,128]{1,0:T(1,128)}', space=vmem, size = 0x12000, scoped, tag = 'internal scratch']
  #allocation2 [shape = 'f32[24,1]{1,0:T(8,128)}', space=vmem, size = 0x3000, scoped, tag = 'scratch operand']
  %s0 = inlined_call_operand.hbm [shape: f32[48,512], index: 0, kind: input, shape index: {}]
  %s1 = inlined_call_operand.hbm [shape: f32[24,512], index: 1, kind: input, shape index: {}]
  %s2 = inlined_call_operand.vmem [shape: f32[1,512], index: 2, kind: input, shape index: {}]
  %s3 = inlined_call_operand.hbm [shape: f32[512,128], index: 3, kind: input, shape index: {}]
  %s4 = inlined_call_operand.vmem [shape: f32[1,128], index: 4, kind: input, shape index: {}]
  %s5 = inlined_call_operand.hbm [shape: f32[2,1,128], index: 5, kind: output, shape index: {}]
  %s6 = sld [smem:[#allocation0]]
  $region81: #{tpu_custom_call.1} parent=0
    _
  %s8 = ssub.s32 1, %s6
  %s9 = scalar_select 0, %s8, %s6
  $region1: #{tpu_custom_call.1} parent=0
    #allocation3 [shape = 'u8[73728]{0}', space=vmem, size = 0x12000, scoped, tag = 'input window, operand 0']
    #allocation4 [shape = 's32[2]{0}', space=sflag, size = 0x8, scoped, tag = 'scoped memory for tpu_custom_call.1']
    #allocation5 [shape = 's32[2]{0}', space=sflag, size = 0x8, scoped, tag = 'scoped memory for tpu_custom_call.1']
    #allocation6 [shape = 'u8[49152]{0}', space=vmem, size = 0xc000, scoped, tag = 'input window, operand 1, single buffered']
    #allocation7 [shape = 's32[1]{0}', space=sflag, size = 0x4, scoped, tag = 'scoped memory for tpu_custom_call.1']
    #allocation8 [shape = 'u8[262144]{0}', space=vmem, size = 0x40000, scoped, tag = 'input window, operand 3, single buffered']
    #allocation9 [shape = 'u8[1024]{0}', space=vmem, size = 0x400, scoped, tag = 'output window, operand 0']
    %10 = vsyncpa [#allocation4], 0
    %s11 = scalar_lea.sflag [#allocation4], 1
    %12 = vsyncpa %s11, 0
    %13 = vsyncpa [#allocation7], 0
    %14 = vsyncpa [#allocation5], 0
    %s15 = scalar_lea.sflag [#allocation5], 1
    %16 = vsyncpa %s15, 0
    loop: start=0, step=1, limit=6
    $region2: #{tpu_custom_call.1} parent=1 // loop_pre_header
      _
    $region3: #{tpu_custom_call.1} parent=1 // loop_header
      %s18 = sphi 0, %s22
      %p19 = scmp.ge.s32.totalorder %s18, 6
      %s25 = sphi 0, %s37
      %s26 = sphi 0, %s33
      %s27 = sphi 0, %s25
      %s28 = sphi 0, %s26
      %s29 = sphi 0, %s27
      %s30 = sphi 0, %s28
      %s42 = sphi 0, %s44
      %s45 = sphi 0, %s42
      %s46 = sphi 0, %s45
      %s62 = sphi 0, %s46
      %s66 = sphi 0, %s66
      %s68 = sphi 0, %s66
      %s69 = sphi 0, %s68
      %s83 = sphi 0, %s69
      %s87 = sphi 0, %s87
      %s89 = sphi 0, %s87
      %s90 = sphi 0, %s89
      %s104 = sphi 0, %s90
      %s108 = sphi 0, %s108
      %s110 = sphi 0, %s108
      %s111 = sphi 0, %s110
      %s125 = sphi 0, %s111
      %s129 = sphi 0, %s129
      %s131 = sphi 0, %s129
      %s132 = sphi 0, %s131
      %s146 = sphi 0, %s132
      %s152 = sphi 0, %s154
      %s155 = sphi 0, %s152
      %s156 = sphi 0, %s155
      %s172 = sphi 0, %s156
    $region4: #{tpu_custom_call.1} parent=1 // loop_header_branch
      %21 = sbr.rel (%p19) target = $region8
    $region5: #{tpu_custom_call.1} parent=1 // loop_body
      %s23 = ssub.s32 %s18, 1
      %s24 = ssub.s32 %s18, 2
      %s31 = sadd.s32 1, %s26
      %p32 = scmp.ge.s32.totalorder %s31, 2
      %s33 = scalar_select %p32, 0, %s31
      %s34 = sadd.s32 1, %s25
      %s35 = scalar_select %p32, %s34, %s25
      %p36 = scmp.ge.s32.totalorder %s35, 2
      %s37 = scalar_select %p36, 0, %s35
      %s38 = ssub.s32 %s25, %s37
      %s39 = ssub.s32 %s26, %s33
      %s40 = sor.u32 %s38, %s39
      %p41 = scmp.eq.s32.totalorder %s40, 0
      %s43 = sadd.s32 %s42, 1
      %s44 = scalar_select %p41, %s42, %s43
      %p47 = pneg %p41
      %p48 = scmp.eq.s32.totalorder %s18, 3
      %p49 = por %p47, %p48
      %p50 = scmp.ne.s32.totalorder %s42, %s45
      %p51 = scmp.eq.s32.totalorder %s18, 0
      %p52 = por %p50, %p51
      %p53 = scmp.ne.s32.totalorder %s42, %s45
      %p54 = scmp.eq.s32.totalorder %s23, 3
      %p55 = por %p53, %p54
      %p56 = scmp.ne.s32.totalorder %s45, %s46
      %p57 = scmp.eq.s32.totalorder %s23, 0
      %p58 = por %p56, %p57
      %p59 = scmp.ne.s32.totalorder %s45, %s46
      %p60 = scmp.eq.s32.totalorder %s24, 3
      %p61 = por %p59, %p60
      %p63 = scmp.ne.s32.totalorder %s46, %s62
      %p64 = scmp.eq.s32.totalorder %s24, 0
      %p65 = por %p63, %p64
      %s67 = sadd.s32 %s66, 1
      %p70 = scmp.eq.s32.totalorder %s18, 3
      %p71 = scmp.ne.s32.totalorder %s66, %s68
      %p72 = scmp.eq.s32.totalorder %s18, 0
      %p73 = por %p71, %p72
      %p74 = scmp.ne.s32.totalorder %s66, %s68
      %p75 = scmp.eq.s32.totalorder %s23, 3
      %p76 = por %p74, %p75
      %p77 = scmp.ne.s32.totalorder %s68, %s69
      %p78 = scmp.eq.s32.totalorder %s23, 0
      %p79 = por %p77, %p78
      %p80 = scmp.ne.s32.totalorder %s68, %s69
      %p81 = scmp.eq.s32.totalorder %s24, 3
      %p82 = por %p80, %p81
      %p84 = scmp.ne.s32.totalorder %s69, %s83
      %p85 = scmp.eq.s32.totalorder %s24, 0
      %p86 = por %p84, %p85
      %s88 = sadd.s32 %s87, 1
      %p91 = scmp.eq.s32.totalorder %s18, 3
      %p92 = scmp.ne.s32.totalorder %s87, %s89
      %p93 = scmp.eq.s32.totalorder %s18, 0
      %p94 = por %p92, %p93
      %p95 = scmp.ne.s32.totalorder %s87, %s89
      %p96 = scmp.eq.s32.totalorder %s23, 3
      %p97 = por %p95, %p96
      %p98 = scmp.ne.s32.totalorder %s89, %s90
      %p99 = scmp.eq.s32.totalorder %s23, 0
      %p100 = por %p98, %p99
      %p101 = scmp.ne.s32.totalorder %s89, %s90
      %p102 = scmp.eq.s32.totalorder %s24, 3
      %p103 = por %p101, %p102
      %p105 = scmp.ne.s32.totalorder %s90, %s104
      %p106 = scmp.eq.s32.totalorder %s24, 0
      %p107 = por %p105, %p106
      %s109 = sadd.s32 %s108, 1
      %p112 = scmp.eq.s32.totalorder %s18, 3
      %p113 = scmp.ne.s32.totalorder %s108, %s110
      %p114 = scmp.eq.s32.totalorder %s18, 0
      %p115 = por %p113, %p114
      %p116 = scmp.ne.s32.totalorder %s108, %s110
      %p117 = scmp.eq.s32.totalorder %s23, 3
      %p118 = por %p116, %p117
      %p119 = scmp.ne.s32.totalorder %s110, %s111
      %p120 = scmp.eq.s32.totalorder %s23, 0
      %p121 = por %p119, %p120
      %p122 = scmp.ne.s32.totalorder %s110, %s111
      %p123 = scmp.eq.s32.totalorder %s24, 3
      %p124 = por %p122, %p123
      %p126 = scmp.ne.s32.totalorder %s111, %s125
      %p127 = scmp.eq.s32.totalorder %s24, 0
      %p128 = por %p126, %p127
      %s130 = sadd.s32 %s129, 1
      %p133 = scmp.eq.s32.totalorder %s18, 3
      %p134 = scmp.ne.s32.totalorder %s129, %s131
      %p135 = scmp.eq.s32.totalorder %s18, 0
      %p136 = por %p134, %p135
      %p137 = scmp.ne.s32.totalorder %s129, %s131
      %p138 = scmp.eq.s32.totalorder %s23, 3
      %p139 = por %p137, %p138
      %p140 = scmp.ne.s32.totalorder %s131, %s132
      %p141 = scmp.eq.s32.totalorder %s23, 0
      %p142 = por %p140, %p141
      %p143 = scmp.ne.s32.totalorder %s131, %s132
      %p144 = scmp.eq.s32.totalorder %s24, 3
      %p145 = por %p143, %p144
      %p147 = scmp.ne.s32.totalorder %s132, %s146
      %p148 = scmp.eq.s32.totalorder %s24, 0
      %p149 = por %p147, %p148
      %s150 = ssub.s32 %s25, %s37
      %p151 = scmp.eq.s32.totalorder %s150, 0
      %s153 = sadd.s32 %s152, 1
      %s154 = scalar_select %p151, %s152, %s153
      %p157 = pneg %p151
      %p158 = scmp.eq.s32.totalorder %s18, 3
      %p159 = por %p157, %p158
      %p160 = scmp.ne.s32.totalorder %s152, %s155
      %p161 = scmp.eq.s32.totalorder %s18, 0
      %p162 = por %p160, %p161
      %p163 = scmp.ne.s32.totalorder %s152, %s155
      %p164 = scmp.eq.s32.totalorder %s23, 3
      %p165 = por %p163, %p164
      %p166 = scmp.ne.s32.totalorder %s155, %s156
      %p167 = scmp.eq.s32.totalorder %s23, 0
      %p168 = por %p166, %p167
      %p169 = scmp.ne.s32.totalorder %s155, %s156
      %p170 = scmp.eq.s32.totalorder %s24, 3
      %p171 = por %p169, %p170
      %p173 = scmp.ne.s32.totalorder %s156, %s172
      %p174 = scmp.eq.s32.totalorder %s24, 0
      %p175 = por %p173, %p174
      %p176 = scmp.le.s32.totalorder 1, %s18
      %p177 = scmp.lt.s32.totalorder %s18, 5
      %p178 = pnand %p176, %p177
      %p179 = pneg %p178
      // Predicated region
      $region9: #{tpu_custom_call.1} parent=5 // pred_check
        _
      $region10: #{tpu_custom_call.1} parent=5 // pred_check_branch
        %181 = sbr.rel (%p178) target = $region12
      $region11: #{tpu_custom_call.1} parent=5 // pred_region
        %s182 = ssub.s32 %s18, 1
        // Predicated region
        $region13: #{tpu_custom_call.1} parent=11 // pred_check
          %p183 = pneg %p79
        $region14: #{tpu_custom_call.1} parent=11 // pred_check_branch
          %185 = sbr.rel (%p183) target = $region16
        $region15: #{tpu_custom_call.1} parent=11 // pred_region
          %s187 = ssub.s32 1536, 1536
          %188 = vsyncadd [#allocation7], %s187
          %s189 = sshll.u32 [#allocation6], 4
          %s190 = int_to_ptr.vmem [resolvable:$true] %s189
          %195 = dma.hbm_to_vmem [thread:$0]  %s1, 1536, %s190, [#allocation7], 512, 512, 32
        $region16: #{tpu_custom_call.1} parent=11 // pred_fallthru
          _
        // Predicated region
        $region17: #{tpu_custom_call.1} parent=11 // pred_check
          %p196 = pneg %p100
        $region18: #{tpu_custom_call.1} parent=11 // pred_check_branch
          %198 = sbr.rel (%p196) target = $region20
        $region19: #{tpu_custom_call.1} parent=11 // pred_region
          _
        $region20: #{tpu_custom_call.1} parent=11 // pred_fallthru
          _
        // Predicated region
        $region21: #{tpu_custom_call.1} parent=11 // pred_check
          %p199 = pneg %p121
        $region22: #{tpu_custom_call.1} parent=11 // pred_check_branch
          %201 = sbr.rel (%p199) target = $region24
        $region23: #{tpu_custom_call.1} parent=11 // pred_region
          %s203 = ssub.s32 8192, 8192
          %204 = vsyncadd [#allocation7], %s203
          %s205 = sshll.u32 [#allocation8], 4
          %s206 = int_to_ptr.vmem [resolvable:$true] %s205
          %211 = dma.hbm_to_vmem [thread:$0]  %s3, 8192, %s206, [#allocation7], 128, 128, 8
        $region24: #{tpu_custom_call.1} parent=11 // pred_fallthru
          _
        // Predicated region
        $region25: #{tpu_custom_call.1} parent=11 // pred_check
          %p212 = pneg %p142
        $region26: #{tpu_custom_call.1} parent=11 // pred_check_branch
          %214 = sbr.rel (%p212) target = $region28
        $region27: #{tpu_custom_call.1} parent=11 // pred_region
          _
        $region28: #{tpu_custom_call.1} parent=11 // pred_fallthru
          _
      $region12: #{tpu_custom_call.1} parent=5 // pred_fallthru
        _
      %p215 = scmp.lt.s32.totalorder %s18, 4
      // Predicated region
      $region29: #{tpu_custom_call.1} parent=5 // pred_check
        %p216 = pneg %p215
      $region30: #{tpu_custom_call.1} parent=5 // pred_check_branch
        %218 = sbr.rel (%p216) target = $region32
      $region31: #{tpu_custom_call.1} parent=5 // pred_region
        // Predicated region
        $region33: #{tpu_custom_call.1} parent=31 // pred_check
          %p219 = pneg %p52
        $region34: #{tpu_custom_call.1} parent=31 // pred_check_branch
          %221 = sbr.rel (%p219) target = $region36
        $region35: #{tpu_custom_call.1} parent=31 // pred_region
          %s222 = sand.u32 %s42, 1
          %s223 = scalar_lea.sflag [#allocation4], %s222
          %s224 = sand.u32 %s42, 1
          %s225 = smul.addr %s224, 72
          %s226 = scalar_lea.vmem [#allocation3], %s225
          %s227 = smul.u32 3, %s25
          %s228 = smul.u32 3, %s26
          %s229 = ssub.s32 4, %s228
          %p230 = scmp.lt.s32.totalorder %s229, 3
          %s231 = scalar_select %p230, %s229, 3
          %s232 = smul.u32 384, %s231
          %s234 = ssub.s32 1152, %s232
          %235 = vsyncadd %s223, %s234
          %p236 = scmp.ne.s32.totalorder 0, %s232
          %s237 = smul.addr %s227, 4
          %s238 = sadd.s32 %s228, %s237
          %s239 = smul.addr %s238, 128
          %s240 = scalar_lea.hbm %s0, %s239
          %s241 = smul.u32 %s231, 8
          %s242 = smul.u32 %s241, 3
          %s243 = sshll.u32 %s226, 4
          %s244 = int_to_ptr.vmem [resolvable:$true] %s243
          %s245 = sshll.u32 %s242, 4
          %249 = dma.hbm_to_vmem [thread:$0]  (%p236), %s240, %s245, %s244, %s223, 512, 384, %s241
        $region36: #{tpu_custom_call.1} parent=31 // pred_fallthru
          _
      $region32: #{tpu_custom_call.1} parent=5 // pred_fallthru
        _
      %p250 = scmp.le.s32.totalorder 1, %s18
      %p251 = scmp.lt.s32.totalorder %s18, 5
      %p252 = pnand %p250, %p251
      %p253 = pneg %p252
      // Predicated region
      $region37: #{tpu_custom_call.1} parent=5 // pred_check
        _
      $region38: #{tpu_custom_call.1} parent=5 // pred_check_branch
        %255 = sbr.rel (%p252) target = $region40
      $region39: #{tpu_custom_call.1} parent=5 // pred_region
        %s256 = ssub.s32 %s18, 1
        %s257 = sand.u32 %s45, 1
        %s258 = scalar_lea.sflag [#allocation4], %s257
        %s259 = sand.u32 %s45, 1
        %s260 = smul.addr %s259, 72
        %s261 = scalar_lea.vmem [#allocation3], %s260
        // Predicated region
        $region41: #{tpu_custom_call.1} parent=39 // pred_check
          %p262 = pneg %p58
        $region42: #{tpu_custom_call.1} parent=39 // pred_check_branch
          %264 = sbr.rel (%p262) target = $region44
        $region43: #{tpu_custom_call.1} parent=39 // pred_region
          %265 = dma.done %s258, 1152
        $region44: #{tpu_custom_call.1} parent=39 // pred_fallthru
          _
        // Predicated region
        $region45: #{tpu_custom_call.1} parent=39 // pred_check
          %p266 = pneg %p79
        $region46: #{tpu_custom_call.1} parent=39 // pred_check_branch
          %268 = sbr.rel (%p266) target = $region48
        $region47: #{tpu_custom_call.1} parent=39 // pred_region
          %269 = dma.done [#allocation7], 1536
        $region48: #{tpu_custom_call.1} parent=39 // pred_fallthru
          _
        // Predicated region
        $region49: #{tpu_custom_call.1} parent=39 // pred_check
          %p270 = pneg %p121
        $region50: #{tpu_custom_call.1} parent=39 // pred_check_branch
          %272 = sbr.rel (%p270) target = $region52
        $region51: #{tpu_custom_call.1} parent=39 // pred_region
          %273 = dma.done [#allocation7], 8192
        $region52: #{tpu_custom_call.1} parent=39 // pred_fallthru
          _
        %s274 = sand.u32 %s45, 1
        %s275 = scalar_lea.sflag [#allocation4], %s274
        %s276 = sand.u32 %s45, 1
        %s277 = smul.addr %s276, 72
        %s278 = scalar_lea.vmem [#allocation3], %s277
        %p279 = pneg %p58
        %p280 = pneg %p55
        %p281 = pneg %p79
        %p282 = pneg %p76
        %p283 = pneg %p100
        %p284 = pneg %p97
        %p285 = pneg %p121
        %p286 = pneg %p118
        %p287 = pneg %p142
        %p288 = pneg %p139
        %p289 = pneg %p168
        %p290 = pneg %p165
        %s291 = sand.u32 %s155, 1
        %s292 = scalar_lea.sflag [#allocation5], %s291
        %s293 = sand.u32 %s155, 1
        %s294 = scalar_lea.vmem [#allocation9], %s293
        %s295 = smul.u32 3, %s27
        %s296 = smul.u32 3, %s28
        %s297 = ssub.s32 4, %s296
        %p298 = scmp.lt.s32.totalorder %s297, 3
        %s299 = scalar_select %p298, %s297, 3
        %s300 = smul.u32 384, %s299
        %p301 = scmp.eq.s32.totalorder %s28, 0
        // Predicated region
        $region53: #{tpu_custom_call.1} parent=39 // pred_check
          %p302 = pneg %p301
        $region54: #{tpu_custom_call.1} parent=39 // pred_check_branch
          %304 = sbr.rel (%p302) target = $region56
        $region55: #{tpu_custom_call.1} parent=39 // pred_region
          %vm305 = vcmask 7168
          %306 = vst.msk [vmem:[#allocation2] sm:$0xff] %vm305, 0.0
          %307 = vst.msk [vmem:[#allocation2 + $0x8] sm:$0xff] %vm305, 0.0
          %308 = vst.msk [vmem:[#allocation2 + $0x10] sm:$0xff] %vm305, 0.0
        $region56: #{tpu_custom_call.1} parent=39 // pred_fallthru
          _
        %p309 = scmp.eq.s32.totalorder %s28, 1
        // Predicated region
        $region57: #{tpu_custom_call.1} parent=39 // pred_check
          %p310 = pneg %p309
        $region58: #{tpu_custom_call.1} parent=39 // pred_check_branch
          %312 = sbr.rel (%p310) target = $region60
        $region59: #{tpu_custom_call.1} parent=39 // pred_region
          %v313 = vlaneseq
          %v314 = vand.u32 %v313, 127
          %v315 = vadd.s32 %v314, 128
          %v316 = vadd.s32 %v314, 256
          %vm317 = vcmp.lt.s32.totalorder %v314, 128
          %vm318 = vcmp.lt.s32.totalorder %v315, 128
          %vm319 = vcmp.lt.s32.totalorder %v316, 128
          %v320 = vld [vmem:[%s261] sm:$0xff]
          %v321 = vld [vmem:[%s261 + $0x8] sm:$0xff]
          %v322 = vld [vmem:[%s261 + $0x10] sm:$0xff]
          %v323 = vld [vmem:[%s261 + $0x18] sm:$0xff]
          %v324 = vld [vmem:[%s261 + $0x20] sm:$0xff]
          %v325 = vld [vmem:[%s261 + $0x28] sm:$0xff]
          %v326 = vld [vmem:[%s261 + $0x30] sm:$0xff]
          %v327 = vld [vmem:[%s261 + $0x38] sm:$0xff]
          %v328 = vld [vmem:[%s261 + $0x40] sm:$0xff]
          %v329 = vsel %vm317, %v320, 0.0
          %v330 = vsel %vm318, %v321, 0.0
          %v331 = vsel %vm319, %v322, 0.0
          %v332 = vsel %vm317, %v323, 0.0
          %v333 = vsel %vm318, %v324, 0.0
          %v334 = vsel %vm319, %v325, 0.0
          %v335 = vsel %vm317, %v326, 0.0
          %v336 = vsel %vm318, %v327, 0.0
          %v337 = vsel %vm319, %v328, 0.0
          %v338 = vld [vmem:[#allocation2] sm:$0xff]
          %v339 = vld [vmem:[#allocation2 + $0x8] sm:$0xff]
          %v340 = vld [vmem:[#allocation2 + $0x10] sm:$0xff]
          %v341 = vadd.f32 %v329, %v330
          %v342 = vadd.f32 %v341, %v331
          %343 = vadd.xlane.f32.xlu0 %v342
          %v344 = vpop.xlane.xlu0 %343
          %v345 = vadd.f32 %v332, %v333
          %v346 = vadd.f32 %v345, %v334
          %347 = vadd.xlane.f32.xlu0 %v346
          %v348 = vpop.xlane.xlu0 %347
          %v349 = vadd.f32 %v335, %v336
          %v350 = vadd.f32 %v349, %v337
          %351 = vadd.xlane.f32.xlu0 %v350
          %v352 = vpop.xlane.xlu0 %351
          %v353 = vadd.f32 %v338, %v344
          %v354 = vadd.f32 %v339, %v348
          %v355 = vadd.f32 %v340, %v352
          %vm356 = vcmask 7168
          %357 = vst.msk [vmem:[#allocation2] sm:$0xff] %vm356, %v353
          %358 = vst.msk [vmem:[#allocation2 + $0x8] sm:$0xff] %vm356, %v354
          %359 = vst.msk [vmem:[#allocation2 + $0x10] sm:$0xff] %vm356, %v355
        $region60: #{tpu_custom_call.1} parent=39 // pred_fallthru
          _
        %p360 = scmp.ne.s32.totalorder %s28, 1
        // Predicated region
        $region61: #{tpu_custom_call.1} parent=39 // pred_check
          %p361 = pneg %p360
        $region62: #{tpu_custom_call.1} parent=39 // pred_check_branch
          %363 = sbr.rel (%p361) target = $region64
        $region63: #{tpu_custom_call.1} parent=39 // pred_region
          %v364 = vld [vmem:[%s261] sm:$0xff]
          %v365 = vld [vmem:[%s261 + $0x8] sm:$0xff]
          %v366 = vld [vmem:[%s261 + $0x10] sm:$0xff]
          %v367 = vld [vmem:[%s261 + $0x18] sm:$0xff]
          %v368 = vld [vmem:[%s261 + $0x20] sm:$0xff]
          %v369 = vld [vmem:[%s261 + $0x28] sm:$0xff]
          %v370 = vld [vmem:[%s261 + $0x30] sm:$0xff]
          %v371 = vld [vmem:[%s261 + $0x38] sm:$0xff]
          %v372 = vld [vmem:[%s261 + $0x40] sm:$0xff]
          %v373 = vld [vmem:[#allocation2] sm:$0xff]
          %v374 = vld [vmem:[#allocation2 + $0x8] sm:$0xff]
          %v375 = vld [vmem:[#allocation2 + $0x10] sm:$0xff]
          %v376 = vadd.f32 %v364, %v365
          %v377 = vadd.f32 %v376, %v366
          %378 = vadd.xlane.f32.xlu0 %v377
          %v379 = vpop.xlane.xlu0 %378
          %v380 = vadd.f32 %v367, %v368
          %v381 = vadd.f32 %v380, %v369
          %382 = vadd.xlane.f32.xlu0 %v381
          %v383 = vpop.xlane.xlu0 %382
          %v384 = vadd.f32 %v370, %v371
          %v385 = vadd.f32 %v384, %v372
          %386 = vadd.xlane.f32.xlu0 %v385
          %v387 = vpop.xlane.xlu0 %386
          %v388 = vadd.f32 %v373, %v379
          %v389 = vadd.f32 %v374, %v383
          %v390 = vadd.f32 %v375, %v387
          %vm391 = vcmask 7168
          %392 = vst.msk [vmem:[#allocation2] sm:$0xff] %vm391, %v388
          %393 = vst.msk [vmem:[#allocation2 + $0x8] sm:$0xff] %vm391, %v389
          %394 = vst.msk [vmem:[#allocation2 + $0x10] sm:$0xff] %vm391, %v390
        $region64: #{tpu_custom_call.1} parent=39 // pred_fallthru
          _
        // Predicated region
        $region65: #{tpu_custom_call.1} parent=39 // pred_check
          %p395 = pneg %p309
        $region66: #{tpu_custom_call.1} parent=39 // pred_check_branch
          %397 = sbr.rel (%p395) target = $region68
        $region67: #{tpu_custom_call.1} parent=39 // pred_region
          %v398 = vld [vmem:[#allocation2] sm:$0xff]
          %v399 = vld [vmem:[#allocation2 + $0x8] sm:$0xff]
          %v400 = vld [vmem:[#allocation2 + $0x10] sm:$0xff]
          %v401 = vmul.f32 %v398, 0.00048828125
          %v402 = vmul.f32 %v399, 0.00048828125
          %v403 = vmul.f32 %v400, 0.00048828125
          %v404 = vld [vmem:[#allocation6] sm:$0xff]
          %v405 = vld [vmem:[#allocation6 + $0x8] sm:$0xff]
          %v406 = vld [vmem:[#allocation6 + $0x10] sm:$0xff]
          %v407 = vld [vmem:[#allocation6 + $0x18] sm:$0xff]
          %v408 = vld [vmem:[#allocation6 + $0x20] sm:$0xff]
          %v409 = vld [vmem:[#allocation6 + $0x28] sm:$0xff]
          %v410 = vld [vmem:[#allocation6 + $0x30] sm:$0xff]
          %v411 = vld [vmem:[#allocation6 + $0x38] sm:$0xff]
          %v412 = vld [vmem:[#allocation6 + $0x40] sm:$0xff]
          %v413 = vld [vmem:[#allocation6 + $0x48] sm:$0xff]
          %v414 = vld [vmem:[#allocation6 + $0x50] sm:$0xff]
          %v415 = vld [vmem:[#allocation6 + $0x58] sm:$0xff]
          %417 = vset.pattern.permute.xlu0 0
          %418 = vperm.xlu0 %417, %v401
          %v419 = vpop.permute.xlu0 %418
          %422 = vset.pattern.permute.xlu0 0
          %423 = vperm.xlu0 %422, %v402
          %v424 = vpop.permute.xlu0 %423
          %427 = vset.pattern.permute.xlu0 0
          %428 = vperm.xlu0 %427, %v403
          %v429 = vpop.permute.xlu0 %428
          %v431 = vmul.f32 %v419, %v404
          %v432 = vmul.f32 %v419, %v405
          %v433 = vmul.f32 %v419, %v406
          %v434 = vmul.f32 %v419, %v407
          %v435 = vmul.f32 %v424, %v408
          %v436 = vmul.f32 %v424, %v409
          %v437 = vmul.f32 %v424, %v410
          %v438 = vmul.f32 %v424, %v411
          %v439 = vmul.f32 %v429, %v412
          %v440 = vmul.f32 %v429, %v413
          %v441 = vmul.f32 %v429, %v414
          %v442 = vmul.f32 %v429, %v415
          %v443 = vadd.f32 %v431, %v435
          %v444 = vadd.f32 %v443, %v439
          %v445 = vrot.slane %v444, 4
          %v446 = vadd.f32 %v444, %v445
          %v447 = vrot.slane %v446, 2
          %v448 = vadd.f32 %v446, %v447
          %v449 = vrot.slane %v448, 1
          %v450 = vadd.f32 %v448, %v449
          %v451 = vadd.f32 %v432, %v436
          %v452 = vadd.f32 %v451, %v440
          %v453 = vrot.slane %v452, 4
          %v454 = vadd.f32 %v452, %v453
          %v455 = vrot.slane %v454, 2
          %v456 = vadd.f32 %v454, %v455
          %v457 = vrot.slane %v456, 1
          %v458 = vadd.f32 %v456, %v457
          %v459 = vadd.f32 %v433, %v437
          %v460 = vadd.f32 %v459, %v441
          %v461 = vrot.slane %v460, 4
          %v462 = vadd.f32 %v460, %v461
          %v463 = vrot.slane %v462, 2
          %v464 = vadd.f32 %v462, %v463
          %v465 = vrot.slane %v464, 1
          %v466 = vadd.f32 %v464, %v465
          %v467 = vadd.f32 %v434, %v438
          %v468 = vadd.f32 %v467, %v442
          %v469 = vrot.slane %v468, 4
          %v470 = vadd.f32 %v468, %v469
          %v471 = vrot.slane %v470, 2
          %v472 = vadd.f32 %v470, %v471
          %v473 = vrot.slane %v472, 1
          %v474 = vadd.f32 %v472, %v473
          %v475 = vld [vmem:[%s2] sm:$0xf]
          %v477 = vlaneseq
          %v478 = vshrl.u32 %v477, 7
          %v479 = vsub.s32 0, %v478
          %v480 = vrot.slane %v475, %v479
          %v481 = vlaneseq
          %v482 = vshrl.u32 %v481, 7
          %v483 = vsub.s32 1, %v482
          %v484 = vrot.slane %v475, %v483
          %v485 = vlaneseq
          %v486 = vshrl.u32 %v485, 7
          %v487 = vsub.s32 2, %v486
          %v488 = vrot.slane %v475, %v487
          %v489 = vlaneseq
          %v490 = vshrl.u32 %v489, 7
          %v491 = vsub.s32 3, %v490
          %v492 = vrot.slane %v475, %v491
          %v497 = vadd.f32 %v450, %v480
          %v498 = vadd.f32 %v458, %v484
          %v499 = vadd.f32 %v466, %v488
          %v500 = vadd.f32 %v474, %v492
          %v501 = vld [vmem:[#allocation8] sm:$0xff]
          %v502 = vld [vmem:[#allocation8 + $0x8] sm:$0xff]
          %v503 = vld [vmem:[#allocation8 + $0x10] sm:$0xff]
          %v504 = vld [vmem:[#allocation8 + $0x18] sm:$0xff]
          %v505 = vld [vmem:[#allocation8 + $0x20] sm:$0xff]
          %v506 = vld [vmem:[#allocation8 + $0x28] sm:$0xff]
          %v507 = vld [vmem:[#allocation8 + $0x30] sm:$0xff]
          %v508 = vld [vmem:[#allocation8 + $0x38] sm:$0xff]
          %v509 = vld [vmem:[#allocation8 + $0x40] sm:$0xff]
          %v510 = vld [vmem:[#allocation8 + $0x48] sm:$0xff]
          %v511 = vld [vmem:[#allocation8 + $0x50] sm:$0xff]
          %v512 = vld [vmem:[#allocation8 + $0x58] sm:$0xff]
          %v513 = vld [vmem:[#allocation8 + $0x60] sm:$0xff]
          %v514 = vld [vmem:[#allocation8 + $0x68] sm:$0xff]
          %v515 = vld [vmem:[#allocation8 + $0x70] sm:$0xff]
          %v516 = vld [vmem:[#allocation8 + $0x78] sm:$0xff]
          %v517 = vld [vmem:[#allocation8 + $0x80] sm:$0xff]
          %v518 = vld [vmem:[#allocation8 + $0x88] sm:$0xff]
          %v519 = vld [vmem:[#allocation8 + $0x90] sm:$0xff]
          %v520 = vld [vmem:[#allocation8 + $0x98] sm:$0xff]
          %v521 = vld [vmem:[#allocation8 + $0xa0] sm:$0xff]
          %v522 = vld [vmem:[#allocation8 + $0xa8] sm:$0xff]
          %v523 = vld [vmem:[#allocation8 + $0xb0] sm:$0xff]
          %v524 = vld [vmem:[#allocation8 + $0xb8] sm:$0xff]
          %v525 = vld [vmem:[#allocation8 + $0xc0] sm:$0xff]
          %v526 = vld [vmem:[#allocation8 + $0xc8] sm:$0xff]
          %v527 = vld [vmem:[#allocation8 + $0xd0] sm:$0xff]
          %v528 = vld [vmem:[#allocation8 + $0xd8] sm:$0xff]
          %v529 = vld [vmem:[#allocation8 + $0xe0] sm:$0xff]
          %v530 = vld [vmem:[#allocation8 + $0xe8] sm:$0xff]
          %v531 = vld [vmem:[#allocation8 + $0xf0] sm:$0xff]
          %v532 = vld [vmem:[#allocation8 + $0xf8] sm:$0xff]
          %v533 = vld [vmem:[#allocation8 + $0x100] sm:$0xff]
          %v534 = vld [vmem:[#allocation8 + $0x108] sm:$0xff]
          %v535 = vld [vmem:[#allocation8 + $0x110] sm:$0xff]
          %v536 = vld [vmem:[#allocation8 + $0x118] sm:$0xff]
          %v537 = vld [vmem:[#allocation8 + $0x120] sm:$0xff]
          %v538 = vld [vmem:[#allocation8 + $0x128] sm:$0xff]
          %v539 = vld [vmem:[#allocation8 + $0x130] sm:$0xff]
          %v540 = vld [vmem:[#allocation8 + $0x138] sm:$0xff]
          %v541 = vld [vmem:[#allocation8 + $0x140] sm:$0xff]
          %v542 = vld [vmem:[#allocation8 + $0x148] sm:$0xff]
          %v543 = vld [vmem:[#allocation8 + $0x150] sm:$0xff]
          %v544 = vld [vmem:[#allocation8 + $0x158] sm:$0xff]
          %v545 = vld [vmem:[#allocation8 + $0x160] sm:$0xff]
          %v546 = vld [vmem:[#allocation8 + $0x168] sm:$0xff]
          %v547 = vld [vmem:[#allocation8 + $0x170] sm:$0xff]
          %v548 = vld [vmem:[#allocation8 + $0x178] sm:$0xff]
          %v549 = vld [vmem:[#allocation8 + $0x180] sm:$0xff]
          %v550 = vld [vmem:[#allocation8 + $0x188] sm:$0xff]
          %v551 = vld [vmem:[#allocation8 + $0x190] sm:$0xff]
          %v552 = vld [vmem:[#allocation8 + $0x198] sm:$0xff]
          %v553 = vld [vmem:[#allocation8 + $0x1a0] sm:$0xff]
          %v554 = vld [vmem:[#allocation8 + $0x1a8] sm:$0xff]
          %v555 = vld [vmem:[#allocation8 + $0x1b0] sm:$0xff]
          %v556 = vld [vmem:[#allocation8 + $0x1b8] sm:$0xff]
          %v557 = vld [vmem:[#allocation8 + $0x1c0] sm:$0xff]
          %v558 = vld [vmem:[#allocation8 + $0x1c8] sm:$0xff]
          %v559 = vld [vmem:[#allocation8 + $0x1d0] sm:$0xff]
          %v560 = vld [vmem:[#allocation8 + $0x1d8] sm:$0xff]
          %v561 = vld [vmem:[#allocation8 + $0x1e0] sm:$0xff]
          %v562 = vld [vmem:[#allocation8 + $0x1e8] sm:$0xff]
          %v563 = vld [vmem:[#allocation8 + $0x1f0] sm:$0xff]
          %v564 = vld [vmem:[#allocation8 + $0x1f8] sm:$0xff]
          %v565 = vld [vmem:[%s4] sm:$0x1]
          %566 = vmatprep.subr.mxu0 0.0
          %567 = vmatpush1.msra.mxu0 %v501
          %568 = vmatprep.subr.mxu0 0.0
          %569 = vmatpush1.msra.mxu0 %v502
          %570 = vmatprep.subr.mxu0 0.0
          %571 = vmatpush1.msra.mxu0 %v503
          %572 = vmatprep.subr.mxu0 0.0
          %573 = vmatpush1.msra.mxu0 %v504
          %574 = vmatprep.subr.mxu0 0.0
          %575 = vmatpush1.msra.mxu0 %v505
          %576 = vmatprep.subr.mxu0 0.0
          %577 = vmatpush1.msra.mxu0 %v506
          %578 = vmatprep.subr.mxu0 0.0
          %579 = vmatpush1.msra.mxu0 %v507
          %580 = vmatprep.subr.mxu0 0.0
          %581 = vmatpush1.msra.mxu0 %v508
          %582 = vmatprep.subr.mxu0 0.0
          %583 = vmatpush1.msra.mxu0 %v509
          %584 = vmatprep.subr.mxu0 0.0
          %585 = vmatpush1.msra.mxu0 %v510
          %586 = vmatprep.subr.mxu0 0.0
          %587 = vmatpush1.msra.mxu0 %v511
          %588 = vmatprep.subr.mxu0 0.0
          %589 = vmatpush1.msra.mxu0 %v512
          %590 = vmatprep.subr.mxu0 0.0
          %591 = vmatpush1.msra.mxu0 %v513
          %592 = vmatprep.subr.mxu0 0.0
          %593 = vmatpush1.msra.mxu0 %v514
          %594 = vmatprep.subr.mxu0 0.0
          %595 = vmatpush1.msra.mxu0 %v515
          %596 = vmatprep.subr.mxu0 0.0
          %597 = vmatpush1.msra.mxu0 %v516
          %598 = vmatprep.subr.mxu0 0.0
          %599 = vmatpush1.msra.mxu0 %v517
          %600 = vmatprep.subr.mxu0 0.0
          %601 = vmatpush1.msra.mxu0 %v518
          %602 = vmatprep.subr.mxu0 0.0
          %603 = vmatpush1.msra.mxu0 %v519
          %604 = vmatprep.subr.mxu0 0.0
          %605 = vmatpush1.msra.mxu0 %v520
          %606 = vmatprep.subr.mxu0 0.0
          %607 = vmatpush1.msra.mxu0 %v521
          %608 = vmatprep.subr.mxu0 0.0
          %609 = vmatpush1.msra.mxu0 %v522
          %610 = vmatprep.subr.mxu0 0.0
          %611 = vmatpush1.msra.mxu0 %v523
          %612 = vmatprep.subr.mxu0 0.0
          %613 = vmatpush1.msra.mxu0 %v524
          %614 = vmatprep.subr.mxu0 0.0
          %615 = vmatpush1.msra.mxu0 %v525
          %616 = vmatprep.subr.mxu0 0.0
          %617 = vmatpush1.msra.mxu0 %v526
          %618 = vmatprep.subr.mxu0 0.0
          %619 = vmatpush1.msra.mxu0 %v527
          %620 = vmatprep.subr.mxu0 0.0
          %621 = vmatpush1.msra.mxu0 %v528
          %622 = vmatprep.subr.mxu0 0.0
          %623 = vmatpush1.msra.mxu0 %v529
          %624 = vmatprep.subr.mxu0 0.0
          %625 = vmatpush1.msra.mxu0 %v530
          %626 = vmatprep.subr.mxu0 0.0
          %627 = vmatpush1.msra.mxu0 %v531
          %628 = vmatprep.subr.mxu0 0.0
          %629 = vmatpush1.msra.mxu0 %v532
          %630 = vmatprep.mubr.f32.mxu0 %v498
          %631 = vmatmul.mubr.f32.gmra.mrb[0].mxu0 %v497
          %v632 = vpop.f32.mrb[0].mxu0
          %v633 = vadd.f32 %v565, %v632
          %v634 = vpop.f32.mrb[0].mxu0
          %635 = vdwg.mxu0
          %636 = vmatprep.subr.mxu0 0.0
          %637 = vmatpush1.msra.mxu0 %v533
          %638 = vmatprep.subr.mxu0 0.0
          %639 = vmatpush1.msra.mxu0 %v534
          %640 = vmatprep.subr.mxu0 0.0
          %641 = vmatpush1.msra.mxu0 %v535
          %642 = vmatprep.subr.mxu0 0.0
          %643 = vmatpush1.msra.mxu0 %v536
          %644 = vmatprep.subr.mxu0 0.0
          %645 = vmatpush1.msra.mxu0 %v537
          %646 = vmatprep.subr.mxu0 0.0
          %647 = vmatpush1.msra.mxu0 %v538
          %648 = vmatprep.subr.mxu0 0.0
          %649 = vmatpush1.msra.mxu0 %v539
          %650 = vmatprep.subr.mxu0 0.0
          %651 = vmatpush1.msra.mxu0 %v540
          %652 = vmatprep.subr.mxu0 0.0
          %653 = vmatpush1.msra.mxu0 %v541
          %654 = vmatprep.subr.mxu0 0.0
          %655 = vmatpush1.msra.mxu0 %v542
          %656 = vmatprep.subr.mxu0 0.0
          %657 = vmatpush1.msra.mxu0 %v543
          %658 = vmatprep.subr.mxu0 0.0
          %659 = vmatpush1.msra.mxu0 %v544
          %660 = vmatprep.subr.mxu0 0.0
          %661 = vmatpush1.msra.mxu0 %v545
          %662 = vmatprep.subr.mxu0 0.0
          %663 = vmatpush1.msra.mxu0 %v546
          %664 = vmatprep.subr.mxu0 0.0
          %665 = vmatpush1.msra.mxu0 %v547
          %666 = vmatprep.subr.mxu0 0.0
          %667 = vmatpush1.msra.mxu0 %v548
          %668 = vmatprep.subr.mxu0 0.0
          %669 = vmatpush1.msra.mxu0 %v549
          %670 = vmatprep.subr.mxu0 0.0
          %671 = vmatpush1.msra.mxu0 %v550
          %672 = vmatprep.subr.mxu0 0.0
          %673 = vmatpush1.msra.mxu0 %v551
          %674 = vmatprep.subr.mxu0 0.0
          %675 = vmatpush1.msra.mxu0 %v552
          %676 = vmatprep.subr.mxu0 0.0
          %677 = vmatpush1.msra.mxu0 %v553
          %678 = vmatprep.subr.mxu0 0.0
          %679 = vmatpush1.msra.mxu0 %v554
          %680 = vmatprep.subr.mxu0 0.0
          %681 = vmatpush1.msra.mxu0 %v555
          %682 = vmatprep.subr.mxu0 0.0
          %683 = vmatpush1.msra.mxu0 %v556
          %684 = vmatprep.subr.mxu0 0.0
          %685 = vmatpush1.msra.mxu0 %v557
          %686 = vmatprep.subr.mxu0 0.0
          %687 = vmatpush1.msra.mxu0 %v558
          %688 = vmatprep.subr.mxu0 0.0
          %689 = vmatpush1.msra.mxu0 %v559
          %690 = vmatprep.subr.mxu0 0.0
          %691 = vmatpush1.msra.mxu0 %v560
          %692 = vmatprep.subr.mxu0 0.0
          %693 = vmatpush1.msra.mxu0 %v561
          %694 = vmatprep.subr.mxu0 0.0
          %695 = vmatpush1.msra.mxu0 %v562
          %696 = vmatprep.subr.mxu0 0.0
          %697 = vmatpush1.msra.mxu0 %v563
          %698 = vmatprep.subr.mxu0 0.0
          %699 = vmatpush1.msra.mxu0 %v564
          %700 = vmatprep.mubr.f32.mxu0 %v500
          %701 = vmatmul.mubr.f32.gmra.mrb[0].mxu0 %v499
          %v702 = vpop.f32.mrb[0].mxu0
          %v703 = vadd.f32 %v633, %v702
          %v704 = vpop.f32.mrb[0].mxu0
          %705 = vdwg.mxu0
          %v706 = vmax.f32 %v703, 0.0
          %707 = vst [vmem:[%s294] sm:$0x1] %v706
        $region68: #{tpu_custom_call.1} parent=39 // pred_fallthru
          _
        %s708 = sand.u32 %s155, 1
        %s709 = scalar_lea.sflag [#allocation5], %s708
        %s710 = sand.u32 %s155, 1
        %s711 = scalar_lea.vmem [#allocation9], %s710
        // Predicated region
        $region69: #{tpu_custom_call.1} parent=39 // pred_check
          %p712 = pneg %p165
        $region70: #{tpu_custom_call.1} parent=39 // pred_check_branch
          %714 = sbr.rel (%p712) target = $region72
        $region71: #{tpu_custom_call.1} parent=39 // pred_region
          %s716 = ssub.s32 16, 16
          %717 = vsyncadd %s709, %s716
          %s718 = smul.addr %s27, 16
          %s719 = scalar_lea.hbm %s5, %s718
          %s721 = sshll.u32 %s711, 4
          %s722 = int_to_ptr.vmem [resolvable:$true] %s721
          %724 = dma.vmem_to_hbm [thread:$0]  %s722, 16, %s719, %s709
        $region72: #{tpu_custom_call.1} parent=39 // pred_fallthru
          _
      $region40: #{tpu_custom_call.1} parent=5 // pred_fallthru
        _
      %p725 = scmp.le.s32.totalorder 2, %s18
      // Predicated region
      $region73: #{tpu_custom_call.1} parent=5 // pred_check
        %p726 = pneg %p725
      $region74: #{tpu_custom_call.1} parent=5 // pred_check_branch
        %728 = sbr.rel (%p726) target = $region76
      $region75: #{tpu_custom_call.1} parent=5 // pred_region
        %s729 = ssub.s32 %s18, 2
        // Predicated region
        $region77: #{tpu_custom_call.1} parent=75 // pred_check
          %p730 = pneg %p171
        $region78: #{tpu_custom_call.1} parent=75 // pred_check_branch
          %732 = sbr.rel (%p730) target = $region80
        $region79: #{tpu_custom_call.1} parent=75 // pred_region
          %s733 = sand.u32 %s156, 1
          %s734 = scalar_lea.sflag [#allocation5], %s733
          %s735 = sand.u32 %s156, 1
          %s736 = scalar_lea.vmem [#allocation9], %s735
          %737 = dma.done %s734, 16
        $region80: #{tpu_custom_call.1} parent=75 // pred_fallthru
          _
      $region76: #{tpu_custom_call.1} parent=5 // pred_fallthru
        _
    $region6: #{tpu_custom_call.1} parent=1 // loop_footer
      %s22 = sadd.s32 1, %s18
    $region7: #{tpu_custom_call.1} parent=1 // loop_footer_branch
      %17 = sbr.rel target = $region3
    $region8: #{tpu_custom_call.1} parent=1 // loop_exit
      _
    %738 = vsyncpa [#allocation4], 1
    %s739 = scalar_lea.sflag [#allocation4], 1
    %740 = vsyncpa %s739, 1
    %741 = vsyncpa [#allocation7], 1
    %742 = vsyncpa [#allocation5], 1
    %s743 = scalar_lea.sflag [#allocation5], 1
    %744 = vsyncpa %s743, 1

</llo_original>
